<compile_context>
chip_gen: v7x
topology: tpu7x:2x2x1
jax: 0.10.0
libtpu: 0.0.40
codegen_flags: <defaults>
</compile_context>

<pallas_src>
import math
from functools import partial

import jax
import jax.numpy as jnp
import numpy as np
from jax import lax
from jax.experimental import pallas as pl
from jax.experimental.pallas import tpu as pltpu


# ----------------------------------------------------------------------------
# Hyperparameters (match the PyTorch module exactly)
# ----------------------------------------------------------------------------
def doda_hyperparams(channel: int, n: int = 2, b: int = 2, inter: str = "ceil"):
    kernel_size = int(abs((math.log(channel, 2) + 1) / 2))
    kernel_size = kernel_size if kernel_size % 2 else kernel_size + 1
    layer_size = 1 + (math.log(channel, 2) - b) / (2 * n)
    layer_size = math.ceil(layer_size) if inter == "ceil" else math.floor(layer_size)
    return kernel_size, layer_size


def make_conv_weight(key, kernel_size: int) -> jnp.ndarray:
    # nn.Conv1d default init: uniform in +-1/sqrt(fan_in).
    bound = 1.0 / math.sqrt(1 * kernel_size)
    return jax.random.uniform(
        key, (kernel_size,), dtype=jnp.float32, minval=-bound, maxval=bound
    )


def _round_up(v: int, m: int) -> int:
    return (v + m - 1) // m * m


def _composed_conv_matrix(w: jnp.ndarray, C: int, n_convs: int) -> jnp.ndarray:
    """(C, C) matrix M such that  x_out = x_in @ M  ==  n_convs zero-padded convs."""
    k = int(w.shape[0])
    pad = k // 2
    i_idx = np.arange(C)[:, None]
    c_idx = np.arange(C)[None, :]
    j_idx = i_idx - c_idx + pad                      # tap index feeding (i -> c)
    valid = jnp.asarray((j_idx >= 0) & (j_idx < k))
    j_cl = jnp.asarray(np.clip(j_idx, 0, k - 1))
    T = jnp.where(valid, w[j_cl], 0.0).astype(jnp.float32)
    M = T
    for _ in range(n_convs - 1):                     # exact composition of repeats
        M = jnp.matmul(M, T, precision=jax.lax.Precision.HIGHEST)
    return M


# ----------------------------------------------------------------------------
# Kernels
# ----------------------------------------------------------------------------
def _doda_mxu_kernel(m_ref, x_ref, o_ref):
    """o = x + sigmoid(x @ M); M is the composed banded conv matrix (VMEM-resident)."""
    x = x_ref[...]                                                    # (TB, C) f32
    h = jnp.dot(x, m_ref[...], preferred_element_type=jnp.float32)   # MXU
    o_ref[...] = x + jax.nn.sigmoid(h)


def _doda_roll_kernel(w_ref, x_ref, o_ref, *, n_convs: int, k: int, C: int, Cp: int,
                      compute_dtype):
    """Roll-based conv chain.  Requires Cp - C >= k//2 and zero padding lanes on input.

    w_ref : SMEM (k,) f32 conv taps
    x_ref : VMEM (TB, Cp) f32, lanes >= C zero for valid rows
    o_ref : VMEM (TB, Cp) f32
    """
    x = x_ref[...]
    pad = k // 2
    h = x.astype(compute_dtype)

    keep = None
    if Cp > C:
        lane = lax.broadcasted_iota(jnp.int32, x.shape, 1)
        keep = lane < C                               # hoisted: computed once, reused
    taps = [w_ref[j].astype(compute_dtype) for j in range(k)]   # hoisted SMEM reads
    zero = jnp.zeros((), compute_dtype)

    for _ in range(n_convs):                          # static, small (2-5)
        acc = jnp.zeros_like(h)
        for j in range(k):                            # static k taps (1-7)
            # out[c] += w[j] * h[c - pad + j]  ->  rolled[c] = h[c - s], s = pad - j.
            # No wrap masks needed: s > 0 wrap reads only the always-zero padding
            # lanes (Cp - C >= pad); s < 0 wrap garbage lands only in lanes >= C
            # and is cleaned by the single per-conv `keep` mask below.
            s = pad - j
            rolled = h if s == 0 else pltpu.roll(h, shift=s % Cp, axis=1)
            acc = acc + taps[j] * rolled
        if keep is not None:
            acc = jnp.where(keep, acc, zero)          # re-establish zero-pad invariant
        h = acc

    o_ref[...] = x + jax.nn.sigmoid(h.astype(jnp.float32))


# ----------------------------------------------------------------------------
# Wrapper
# ----------------------------------------------------------------------------
def _pick_tb(B: int, lanes: int, matrix_bytes: int = 0) -> int:
    """Batch tile size: multiple of 8 (or == B for tiny B), VMEM-budgeted,
    >= 2 grid steps when B >= 16 so v7x's two TensorCores both get work."""
    if B <= 8:
        return B
    b8 = (B // 8) * 8
    row_bytes = lanes * 4
    prefer = 2048 if lanes <= 256 else (1024 if lanes <= 512 else 512)
    budget = (40 << 20) - 2 * matrix_bytes            # conservative (v7x: 64 MiB VMEM)
    tb_vmem = max(8, (budget // (4 * row_bytes)) // 8 * 8)
    tb = max(8, min(prefer, tb_vmem, b8))
    if B >= 16 and (B + tb - 1) // tb < 2:
        tb = max(8, ((b8 // 2) // 8) * 8)
    return tb


def doda_forward(x: jnp.ndarray, w: jnp.ndarray, n: int = 2, b: int = 2,
                 inter: str = "ceil", *, mxu_channel_threshold: int = 2048,
                 roll_compute_dtype=jnp.float32) -> jnp.ndarray:
    """x: (B, C, 1, 1) float32, w: (k,) Conv1d weight. Returns (B, C, 1, 1)."""
    B, C, H, W = x.shape
    assert H == 1 and W == 1, "DODA expects (B, C, 1, 1) input"
    k = int(w.shape[0])
    pad = k // 2
    _, layer_size = doda_hyperparams(C, n=n, b=b, inter=inter)
    n_convs = 1 + layer_size

    w = w.astype(jnp.float32)
    x2d = x.reshape(B, C).astype(jnp.float32)         # free view, no HBM copy

    use_mxu = C <= mxu_channel_threshold

    if use_mxu:
        # Composed banded matmul on the MXU: no channel padding, no pad/slice copies.
        Cp = C
        xin = x2d
        mat = _composed_conv_matrix(w, C, n_convs)
        matrix_bytes = C * C * 4
        kern = _doda_mxu_kernel
        first_spec = pl.BlockSpec((C, C), lambda i: (0, 0))       # VMEM-resident
        first_arg = mat
    else:
        # Roll path: pad channels so Cp - C >= pad (wrap-free rolls, no per-tap masks).
        Cp = _round_up(max(C, 128), 128)
        if Cp - C < pad:
            Cp += 128
        xin = x2d if Cp == C else jnp.pad(x2d, ((0, 0), (0, Cp - C)))
        matrix_bytes = 0
        kern = partial(_doda_roll_kernel, n_convs=n_convs, k=k, C=C, Cp=Cp,
                       compute_dtype=roll_compute_dtype)
        first_spec = pl.BlockSpec(memory_space=pltpu.MemorySpace.SMEM)
        first_arg = w

    TB = _pick_tb(B, Cp, matrix_bytes)
    grid = ((B + TB - 1) // TB,)                      # ragged last tile, no batch pad

    vmem_need = 4 * TB * Cp * 4 + 2 * matrix_bytes    # double-buffered in + out (+ matrix)
    vmem_limit = int(min(max(2 * vmem_need, 16 << 20), 48 << 20))

    out = pl.pallas_call(
        kern,
        out_shape=jax.ShapeDtypeStruct((B, Cp), jnp.float32),
        grid_spec=pltpu.PrefetchScalarGridSpec(
            num_scalar_prefetch=0,
            grid=grid,
            in_specs=[first_spec,
                      pl.BlockSpec((TB, Cp), lambda i: (i, 0))],
            out_specs=pl.BlockSpec((TB, Cp), lambda i: (i, 0)),
        ),
        compiler_params=pltpu.CompilerParams(
            dimension_semantics=("parallel",),
            vmem_limit_bytes=vmem_limit,
        ),
        input_output_aliases={1: 0},                  # reuse x's HBM buffer for the output
    )(first_arg, xin)

    if Cp != C:
        out = out[:, :C]
    return out.reshape(B, C, 1, 1)


# ----------------------------------------------------------------------------
# Pure-JAX reference (exact f32 elementwise conv, matches PyTorch semantics)
# ----------------------------------------------------------------------------
def doda_reference(x: jnp.ndarray, w: jnp.ndarray, n: int = 2, b: int = 2,
                   inter: str = "ceil") -> jnp.ndarray:
    B, C, _, _ = x.shape
    k = int(w.shape[0])
    pad = k // 2
    _, layer_size = doda_hyperparams(C, n=n, b=b, inter=inter)
    n_convs = 1 + layer_size

    h = x.reshape(B, C).astype(jnp.float32)
    w = w.astype(jnp.float32)
    for _ in range(n_convs):
        hp = jnp.pad(h, ((0, 0), (pad, pad)))
        acc = jnp.zeros_like(h)
        for j in range(k):
            acc = acc + w[j] * hp[:, j:j + C]
        h = acc
    return x + jax.nn.sigmoid(h).reshape(B, C, 1, 1)


# ----------------------------------------------------------------------------
if __name__ == "__main__":
    key = jax.random.PRNGKey(0)

    def check(B, C, *, mxu_channel_threshold=2048, rtol, atol, tag):
        kk = jax.random.fold_in(key, B * 1000 + C)
        k_w, k_x = jax.random.split(kk)
        kernel_size, _ = doda_hyperparams(C)
        w = make_conv_weight(k_w, kernel_size)
        x = jax.random.normal(k_x, (B, C, 1, 1), dtype=jnp.float32)
        out = jax.block_until_ready(
            doda_forward(x, w, mxu_channel_threshold=mxu_channel_threshold))
        ref = jax.block_until_ready(doda_reference(x, w))
        assert out.shape == (B, C, 1, 1)
        np.testing.assert_allclose(np.asarray(out), np.asarray(ref),
                                   rtol=rtol, atol=atol, err_msg=tag)

    # MXU (composed banded matmul) path -- the default.  Tolerance allows for
    # the in-kernel f32 matmul running at MXU default (bf16-pass) precision.
    check(8, 32, rtol=1e-2, atol=1e-2, tag="mxu B=8 C=32")
    check(20, 96, rtol=1e-2, atol=1e-2, tag="mxu B=20 C=96 ragged batch, grid=2")

    # Roll (XLU shift + VPU FMA) path -- forced; exact f32 arithmetic.
    check(2, 32, mxu_channel_threshold=-1, rtol=1e-5, atol=1e-5,
          tag="roll B=2 C=32")
    check(10, 96, mxu_channel_threshold=-1, rtol=1e-5, atol=1e-5,
          tag="roll B=10 C=96 ragged batch")

    print("KERNEL_OK")
</pallas_src>

<mosaic_0001>
module attributes {stable_mosaic.version = 11 : i64} {
  func.func @_doda_mxu_kernel(%arg0: i32, %arg1: memref<32x32xf32, #tpu.memory_space<vmem>>, %arg2: memref<8x32xf32, #tpu.memory_space<vmem>>, %arg3: memref<8x32xf32, #tpu.memory_space<vmem>>) attributes {dimension_semantics = [#tpu.dimension_semantics<parallel>], iteration_bounds = array<i64: 1>, scalar_prefetch = 0 : i64, scratch_operands = 0 : i64, tpu.core_type = #tpu.core_type<tc>, window_params = [{pipeline_mode = #tpu.pipeline_mode<synchronous>, transform_indices = @transform_0, window_bounds = array<i64: 32, 32>}, {transform_indices = @transform_1, window_bounds = array<i64: 8, 32>}, {transform_indices = @transform_2, window_bounds = array<i64: 8, 32>}]} {
    %c0 = arith.constant 0 : index
    %c0_0 = arith.constant 0 : index
    %0 = vector.load %arg2[%c0, %c0_0] : memref<8x32xf32, #tpu.memory_space<vmem>>, vector<8x32xf32>
    %c0_1 = arith.constant 0 : index
    %c0_2 = arith.constant 0 : index
    %1 = vector.load %arg1[%c0_1, %c0_2] : memref<32x32xf32, #tpu.memory_space<vmem>>, vector<32x32xf32>
    %cst = arith.constant dense<0.000000e+00> : vector<8x32xf32>
    %2 = tpu.matmul %0, %1, %cst {dimension_numbers = #tpu.dot_dimension_numbers<[1], [0], [0], [1], [0, 0, 1, 1], [], []>} : vector<8x32xf32>, vector<32x32xf32>, vector<8x32xf32> -> vector<8x32xf32>
    %3 = arith.negf %2 : vector<8x32xf32>
    %4 = math.exp %3 : vector<8x32xf32>
    %cst_3 = arith.constant 1.000000e+00 : f32
    %5 = vector.broadcast %cst_3 : f32 to vector<8x32xf32>
    %6 = arith.addf %5, %4 : vector<8x32xf32>
    %7 = arith.divf %5, %6 : vector<8x32xf32>
    %8 = arith.addf %0, %7 : vector<8x32xf32>
    %c0_4 = arith.constant 0 : index
    %c0_5 = arith.constant 0 : index
    %9 = vector.load %arg3[%c0_4, %c0_5] : memref<8x32xf32, #tpu.memory_space<vmem>>, vector<8x32xf32>
    tpu.vector_store %arg3[%c0_4, %c0_5], %8 {strides = array<i32>} : memref<8x32xf32, #tpu.memory_space<vmem>>, vector<8x32xf32>,
    return
  }
  func.func @transform_0(%arg0: i32) -> (i32, i32) {
    %c0_i32 = arith.constant 0 : i32
    %c0_i32_0 = arith.constant 0 : i32
    %c0_i32_1 = arith.constant 0 : i32
    return %c0_i32, %c0_i32_0 : i32, i32
  }
  func.func @transform_1(%arg0: i32) -> (i32, i32) {
    %c0_i32 = arith.constant 0 : i32
    %c0_i32_0 = arith.constant 0 : i32
    return %arg0, %c0_i32 : i32, i32
  }
  func.func @transform_2(%arg0: i32) -> (i32, i32) {
    %c0_i32 = arith.constant 0 : i32
    %c0_i32_0 = arith.constant 0 : i32
    return %arg0, %c0_i32 : i32, i32
  }
}

</mosaic_0001>

<llo_original>
// kernel: tpu_custom_call.1
$region0: #{tpu_custom_call.1}
  #allocation0 [shape = 'u32[]', space=smem, size = 0x4, offset = 0x4, fixed_abs, tag = 'smem constant byte address 0x4 - core index']
  #allocation1 [shape = 'u32[144,128]{1,0:T(1,128)}', space=vmem, size = 0x12000, scoped, tag = 'internal scratch']
  %s0 = inlined_call_operand.hbm [shape: f32[32,32], index: 0, kind: input, shape index: {}]
  %s1 = inlined_call_operand.hbm [shape: f32[8,32], index: 1, kind: input, shape index: {}, may-alias: {1,2}]
  %s2 = inlined_call_operand.hbm [shape: f32[8,32], index: 2, kind: output, shape index: {}, may-alias: {1,2}]
  %s3 = sld [smem:[#allocation0]]
  $region26: #{tpu_custom_call.1} parent=0
    _
  %s5 = ssub.s32 1, %s3
  %s6 = scalar_select 0, %s5, %s3
  $region1: #{tpu_custom_call.1} parent=0
    #allocation2 [shape = 'u8[16384]{0}', space=vmem, size = 0x4000, scoped, tag = 'input window, operand 0, single buffered']
    #allocation3 [shape = 's32[1]{0}', space=sflag, size = 0x4, scoped, tag = 'scoped memory for tpu_custom_call.1']
    #allocation4 [shape = 's32[1]{0}', space=sflag, size = 0x4, scoped, tag = 'scoped memory for tpu_custom_call.1']
    #allocation5 [shape = 'u8[4096]{0}', space=vmem, size = 0x1000, scoped, tag = 'input window, operand 1, single buffered']
    #allocation6 [shape = 's32[1]{0}', space=sflag, size = 0x4, scoped, tag = 'scoped memory for tpu_custom_call.1']
    #allocation7 [shape = 'u8[4096]{0}', space=vmem, size = 0x1000, scoped, tag = 'output window, operand 0, single buffered']
    %7 = vsyncpa [#allocation3], 0
    %8 = vsyncpa [#allocation6], 0
    %9 = vsyncpa [#allocation4], 0
    // Predicated region
    $region2: #{tpu_custom_call.1} parent=1 // pred_check
      _
    $region3: #{tpu_custom_call.1} parent=1 // pred_check_branch
      %11 = sbr.rel (0) target = $region5
    $region4: #{tpu_custom_call.1} parent=1 // pred_region
      %s13 = ssub.s32 512, 512
      %14 = vsyncadd [#allocation3], %s13
      %s15 = sshll.u32 [#allocation2], 4
      %s16 = int_to_ptr.vmem [resolvable:$true] %s15
      %21 = dma.hbm_to_vmem [thread:$0]  %s0, 512, %s16, [#allocation3], 128, 128, 8
    $region5: #{tpu_custom_call.1} parent=1 // pred_fallthru
      _
    // Predicated region
    $region6: #{tpu_custom_call.1} parent=1 // pred_check
      _
    $region7: #{tpu_custom_call.1} parent=1 // pred_check_branch
      %23 = sbr.rel (0) target = $region9
    $region8: #{tpu_custom_call.1} parent=1 // pred_region
      %s25 = ssub.s32 128, 128
      %26 = vsyncadd [#allocation6], %s25
      %s28 = sshll.u32 [#allocation5], 4
      %s29 = int_to_ptr.vmem [resolvable:$true] %s28
      %31 = dma.hbm_to_vmem [thread:$0]  %s1, 128, %s29, [#allocation6]
    $region9: #{tpu_custom_call.1} parent=1 // pred_fallthru
      _
    // Predicated region
    $region10: #{tpu_custom_call.1} parent=1 // pred_check
      _
    $region11: #{tpu_custom_call.1} parent=1 // pred_check_branch
      %33 = sbr.rel (0) target = $region13
    $region12: #{tpu_custom_call.1} parent=1 // pred_region
      %34 = dma.done [#allocation3], 512
    $region13: #{tpu_custom_call.1} parent=1 // pred_fallthru
      _
    // Predicated region
    $region14: #{tpu_custom_call.1} parent=1 // pred_check
      _
    $region15: #{tpu_custom_call.1} parent=1 // pred_check_branch
      %36 = sbr.rel (0) target = $region17
    $region16: #{tpu_custom_call.1} parent=1 // pred_region
      %37 = dma.done [#allocation6], 128
    $region17: #{tpu_custom_call.1} parent=1 // pred_fallthru
      _
    %v38 = vld [vmem:[#allocation5] sm:$0xff]
    %v39 = vld [vmem:[#allocation2] sm:$0xff]
    %v40 = vld [vmem:[#allocation2 + $0x8] sm:$0xff]
    %v41 = vld [vmem:[#allocation2 + $0x10] sm:$0xff]
    %v42 = vld [vmem:[#allocation2 + $0x18] sm:$0xff]
    %vm43 = vcmask 261120
    %v45 = vsel %vm43, %v38, 0
    %47 = vmatprep.subr.mxu0 0.0
    %48 = vmatpush1.msra.mxu0 %v39
    %49 = vmatprep.subr.mxu0 0.0
    %50 = vmatpush1.msra.mxu0 %v40
    %51 = vmatprep.subr.mxu0 0.0
    %52 = vmatpush1.msra.mxu0 %v41
    %53 = vmatprep.subr.mxu0 0.0
    %54 = vmatpush1.msra.mxu0 %v42
    %55 = vmatprep.subr.mxu0 0.0
    %56 = vmatpush1.msra.mxu0 0.0
    %57 = vmatprep.subr.mxu0 0.0
    %58 = vmatpush1.msra.mxu0 0.0
    %59 = vmatprep.subr.mxu0 0.0
    %60 = vmatpush1.msra.mxu0 0.0
    %61 = vmatprep.subr.mxu0 0.0
    %62 = vmatpush1.msra.mxu0 0.0
    %63 = vmatprep.subr.mxu0 0.0
    %64 = vmatpush1.msra.mxu0 0.0
    %65 = vmatprep.subr.mxu0 0.0
    %66 = vmatpush1.msra.mxu0 0.0
    %67 = vmatprep.subr.mxu0 0.0
    %68 = vmatpush1.msra.mxu0 0.0
    %69 = vmatprep.subr.mxu0 0.0
    %70 = vmatpush1.msra.mxu0 0.0
    %71 = vmatprep.subr.mxu0 0.0
    %72 = vmatpush1.msra.mxu0 0.0
    %73 = vmatprep.subr.mxu0 0.0
    %74 = vmatpush1.msra.mxu0 0.0
    %75 = vmatprep.subr.mxu0 0.0
    %76 = vmatpush1.msra.mxu0 0.0
    %77 = vmatprep.subr.mxu0 0.0
    %78 = vmatpush1.msra.mxu0 0.0
    %79 = vmatprep.subr.mxu0 0.0
    %80 = vmatpush1.msra.mxu0 0.0
    %81 = vmatprep.subr.mxu0 0.0
    %82 = vmatpush1.msra.mxu0 0.0
    %83 = vmatprep.subr.mxu0 0.0
    %84 = vmatpush1.msra.mxu0 0.0
    %85 = vmatprep.subr.mxu0 0.0
    %86 = vmatpush1.msra.mxu0 0.0
    %87 = vmatprep.subr.mxu0 0.0
    %88 = vmatpush1.msra.mxu0 0.0
    %89 = vmatprep.subr.mxu0 0.0
    %90 = vmatpush1.msra.mxu0 0.0
    %91 = vmatprep.subr.mxu0 0.0
    %92 = vmatpush1.msra.mxu0 0.0
    %93 = vmatprep.subr.mxu0 0.0
    %94 = vmatpush1.msra.mxu0 0.0
    %95 = vmatprep.subr.mxu0 0.0
    %96 = vmatpush1.msra.mxu0 0.0
    %97 = vmatprep.subr.mxu0 0.0
    %98 = vmatpush1.msra.mxu0 0.0
    %99 = vmatprep.subr.mxu0 0.0
    %100 = vmatpush1.msra.mxu0 0.0
    %101 = vmatprep.subr.mxu0 0.0
    %102 = vmatpush1.msra.mxu0 0.0
    %103 = vmatprep.subr.mxu0 0.0
    %104 = vmatpush1.msra.mxu0 0.0
    %105 = vmatprep.subr.mxu0 0.0
    %106 = vmatpush1.msra.mxu0 0.0
    %107 = vmatprep.subr.mxu0 0.0
    %108 = vmatpush1.msra.mxu0 0.0
    %109 = vmatprep.subr.mxu0 0.0
    %110 = vmatpush1.msra.mxu0 0.0
    %111 = vmatprep.mubr.f32.mxu0 0.0
    %112 = vmatmul.mubr.f32.gmra.mrb[0].mxu0 %v45
    %v113 = vpop.f32.mrb[0].mxu0
    %v114 = vadd.f32 0.0, %v113
    %v115 = vpop.f32.mrb[0].mxu0
    %116 = vdwg.mxu0
    %v117 = vxor.u32 %v114, 2147483648
    %v118 = vmul.f32 %v117, 1.442695
    %v119 = vpow.pop %v118
    %v120 = vadd.f32 %v119, 1.0
    %v121 = vrcp.pop %v120
    %v122 = vmul.f32 1.0, %v121
    %v123 = vadd.f32 %v38, %v122
    %124 = vst.msk [vmem:[#allocation7] sm:$0xff] %vm43, %v123
    // Predicated region
    $region18: #{tpu_custom_call.1} parent=1 // pred_check
      _
    $region19: #{tpu_custom_call.1} parent=1 // pred_check_branch
      %126 = sbr.rel (0) target = $region21
    $region20: #{tpu_custom_call.1} parent=1 // pred_region
      %s128 = ssub.s32 128, 128
      %129 = vsyncadd [#allocation4], %s128
      %s131 = sshll.u32 [#allocation7], 4
      %s132 = int_to_ptr.vmem [resolvable:$true] %s131
      %134 = dma.vmem_to_hbm [thread:$0]  %s132, 128, %s2, [#allocation4]
    $region21: #{tpu_custom_call.1} parent=1 // pred_fallthru
      _
    // Predicated region
    $region22: #{tpu_custom_call.1} parent=1 // pred_check
      _
    $region23: #{tpu_custom_call.1} parent=1 // pred_check_branch
      %136 = sbr.rel (0) target = $region25
    $region24: #{tpu_custom_call.1} parent=1 // pred_region
      %137 = dma.done [#allocation4], 128
    $region25: #{tpu_custom_call.1} parent=1 // pred_fallthru
      _
    %138 = vsyncpa [#allocation3], 1
    %139 = vsyncpa [#allocation6], 1
    %140 = vsyncpa [#allocation4], 1

</llo_original>
